<compile_context>
chip_gen: v5e
topology: v5e:2x2
jax: 0.10.0
libtpu: 0.0.40
codegen_flags: <defaults>
</compile_context>

<pallas_src>
import math

import jax
import jax.numpy as jnp
from jax.experimental import pallas as pl
from jax.experimental.pallas import tpu as pltpu

HIDDEN = 300           # logical hidden width (PyTorch module)
LANE = 128
SUBLANE = 8
HIDDEN_PAD = 384       # 300 rounded up to a multiple of 128


def _round_up(n, m):
    return ((n + m - 1) // m) * m


def _mlp_kernel(x_ref,
                w1_ref, b1_ref,
                w2_ref, b2_ref,
                w3_ref, b3_ref,
                w4_ref, b4_ref,
                o_ref):
    """Fused 4-layer MLP on one (TB, Din_pad) batch tile; weights VMEM-resident."""

    def dense(h, w_ref, b_ref):
        # MXU matmul in the weight dtype.  bf16 weights are the MXU fast path
        # on v5e, v6e and v7x alike (only v5e's VPU lacks bf16, so bias add /
        # ReLU / clamp stay f32).  Casting activations to the weight dtype per
        # layer is intentional: both operands stay on the bf16 MXU path at a
        # small, bounded precision cost; accumulation is always f32.
        return jnp.dot(h.astype(w_ref.dtype), w_ref[...],
                       preferred_element_type=jnp.float32) + b_ref[...]

    h = jnp.maximum(dense(x_ref[...], w1_ref, b1_ref), 0.0)
    h = jnp.maximum(dense(h, w2_ref, b2_ref), 0.0)
    h = jnp.maximum(dense(h, w3_ref, b3_ref), 0.0)
    h = dense(h, w4_ref, b4_ref)

    # F.relu followed by torch.min(x, ones) == clamp to [0, 1].  One fused VPU
    # chain before a single full-lane-width (unmasked) store.
    o_ref[...] = jnp.minimum(jnp.maximum(h, 0.0), 1.0)


def mlp_forward(x_flat, padded_params, d_out, *, block_b=1024):
    """x_flat: (B, Din) float32.  padded_params: lane-padded weights/biases
    (see pad_params).  Returns (B, d_out) float32 with pad rows/cols sliced off."""
    B, d_in = x_flat.shape
    d_in_pad = padded_params["w1"].shape[0]
    h_pad = padded_params["w1"].shape[1]
    dout_pad = padded_params["w4"].shape[1]

    # Lane-dense input: zero-pad Din up to w1's (padded) row count.  Exact —
    # the extra x columns are zero — and gives unmasked x loads + full-K MXU.
    if d_in_pad != d_in:
        x_flat = jnp.pad(x_flat, ((0, 0), (0, d_in_pad - d_in)))

    # Batch tile: as large as possible so the ~0.35 us fixed per-grid-step
    # overhead is amortized over hundreds of MFLOP.  Modest batches (B <=
    # block_b) run the whole padded batch in a single grid step.
    tb = min(block_b, _round_up(B, SUBLANE))
    b_pad = _round_up(B, tb)
    if b_pad != B:
        x_flat = jnp.pad(x_flat, ((0, b_pad - B), (0, 0)))

    args = (x_flat,
            padded_params["w1"], padded_params["b1"],
            padded_params["w2"], padded_params["b2"],
            padded_params["w3"], padded_params["b3"],
            padded_params["w4"], padded_params["b4"])

    # Weights/biases: same block every step -> stay VMEM-resident (no re-DMA).
    # They are still double-buffered by default; that ~2x VMEM waste
    # (~1.5 MB bf16 / ~3 MB f32) is accepted knowingly — total footprint is
    # well under the 32 MiB default scoped limit even at tb=1024.
    const = lambda i: (0, 0)
    in_specs = [
        pl.BlockSpec((tb, d_in_pad), lambda i: (i, 0)),  # x tile (double-buffered)
        pl.BlockSpec((d_in_pad, h_pad), const),          # w1
        pl.BlockSpec((1, h_pad), const),                 # b1
        pl.BlockSpec((h_pad, h_pad), const),             # w2
        pl.BlockSpec((1, h_pad), const),                 # b2
        pl.BlockSpec((h_pad, h_pad), const),             # w3
        pl.BlockSpec((1, h_pad), const),                 # b3
        pl.BlockSpec((h_pad, dout_pad), const),          # w4
        pl.BlockSpec((1, dout_pad), const),              # b4
    ]

    flops = 2 * b_pad * (d_in_pad * h_pad + 2 * h_pad * h_pad + h_pad * dout_pad)
    bytes_accessed = int(sum(int(a.size) * a.dtype.itemsize for a in args)
                         + b_pad * dout_pad * 4)

    out = pl.pallas_call(
        _mlp_kernel,
        out_shape=jax.ShapeDtypeStruct((b_pad, dout_pad), jnp.float32),
        grid=(b_pad // tb,),
        in_specs=in_specs,
        out_specs=pl.BlockSpec((tb, dout_pad), lambda i: (i, 0)),
        compiler_params=pltpu.CompilerParams(
            dimension_semantics=("parallel",)),   # batch steps independent
        cost_estimate=pl.CostEstimate(
            flops=flops, transcendentals=0, bytes_accessed=bytes_accessed),
    )(*args)

    return out[:B, :d_out]


def init_params(key, d_in, d_out):
    """Unpadded params mimicking nn.Linear default init:
    U(-1/sqrt(fan_in), 1/sqrt(fan_in)); weights stored (fan_in, fan_out)."""
    sizes = [(d_in, HIDDEN), (HIDDEN, HIDDEN), (HIDDEN, HIDDEN), (HIDDEN, d_out)]
    params = {}
    for i, (fi, fo) in enumerate(sizes, start=1):
        key, kw, kb = jax.random.split(key, 3)
        bound = 1.0 / math.sqrt(fi)
        params[f"w{i}"] = jax.random.uniform(kw, (fi, fo), jnp.float32, -bound, bound)
        params[f"b{i}"] = jax.random.uniform(kb, (1, fo), jnp.float32, -bound, bound)
    return params


def pad_params(params, d_out_pad, weight_dtype=jnp.bfloat16):
    """Zero-pad input/hidden/output dims to lane multiples (exact math) and
    narrow the weights to bf16 (MXU-native on v5e/v6e/v7x); biases stay f32."""
    def pad_to(a, rows, cols):
        r, c = a.shape
        return jnp.pad(a, ((0, rows - r), (0, cols - c)))

    d_in = params["w1"].shape[0]
    d_in_pad = _round_up(d_in, LANE)
    return {
        "w1": pad_to(params["w1"], d_in_pad, HIDDEN_PAD).astype(weight_dtype),
        "b1": pad_to(params["b1"], 1, HIDDEN_PAD),
        "w2": pad_to(params["w2"], HIDDEN_PAD, HIDDEN_PAD).astype(weight_dtype),
        "b2": pad_to(params["b2"], 1, HIDDEN_PAD),
        "w3": pad_to(params["w3"], HIDDEN_PAD, HIDDEN_PAD).astype(weight_dtype),
        "b3": pad_to(params["b3"], 1, HIDDEN_PAD),
        "w4": pad_to(params["w4"], HIDDEN_PAD, d_out_pad).astype(weight_dtype),
        "b4": pad_to(params["b4"], 1, d_out_pad),
    }


if __name__ == "__main__":
    key = jax.random.PRNGKey(0)
    k_x, k_p = jax.random.split(key)

    # Small NCHW-style input: (B=2, C=4, H=4, W=4) -> flattened Din = 64
    # (exercises the Din -> 128 lane padding path).
    B, C, H, W = 2, 4, 4, 4
    n_channels_in = C * H * W      # 64
    n_channels_out = 32

    x = jax.random.normal(k_x, (B, C, H, W), jnp.float32)
    x_flat = x.reshape(B, -1)      # == torch input.view(B, -1)

    params = init_params(k_p, n_channels_in, n_channels_out)
    d_out_pad = _round_up(n_channels_out, LANE)

    # Plain-JAX reference of the same (unpadded) math.
    def ref(xf, p):
        h = jnp.maximum(xf @ p["w1"] + p["b1"], 0.0)
        h = jnp.maximum(h @ p["w2"] + p["b2"], 0.0)
        h = jnp.maximum(h @ p["w3"] + p["b3"], 0.0)
        h = h @ p["w4"] + p["b4"]
        return jnp.minimum(jnp.maximum(h, 0.0), 1.0)

    expected = ref(x_flat, params)

    # f32-weight path (exact vs the unpadded reference).
    out_f32 = mlp_forward(x_flat, pad_params(params, d_out_pad, jnp.float32),
                          n_channels_out)
    out_f32 = jax.block_until_ready(out_f32)
    assert out_f32.shape == (B, n_channels_out)
    assert bool(jnp.all(out_f32 >= 0.0)) and bool(jnp.all(out_f32 <= 1.0))
    assert jnp.allclose(out_f32, expected, atol=1e-5, rtol=1e-5)

    # Default bf16-weight path (MXU fast path on all chips); f32 accumulation,
    # intentional per-layer bf16 activation cast -> looser tolerance.
    out_bf16 = mlp_forward(x_flat, pad_params(params, d_out_pad),
                           n_channels_out)
    out_bf16 = jax.block_until_ready(out_bf16)
    assert out_bf16.shape == (B, n_channels_out)
    assert bool(jnp.all(out_bf16 >= 0.0)) and bool(jnp.all(out_bf16 <= 1.0))
    assert jnp.allclose(out_bf16, expected, atol=5e-2, rtol=5e-2)

    print("KERNEL_OK")
</pallas_src>

<mosaic_0001>
module attributes {stable_mosaic.version = 11 : i64} {
  func.func @_mlp_kernel(%arg0: i32, %arg1: memref<8x128xf32, #tpu.memory_space<vmem>>, %arg2: memref<128x384xf32, #tpu.memory_space<vmem>>, %arg3: memref<1x384xf32, #tpu.memory_space<vmem>>, %arg4: memref<384x384xf32, #tpu.memory_space<vmem>>, %arg5: memref<1x384xf32, #tpu.memory_space<vmem>>, %arg6: memref<384x384xf32, #tpu.memory_space<vmem>>, %arg7: memref<1x384xf32, #tpu.memory_space<vmem>>, %arg8: memref<384x128xf32, #tpu.memory_space<vmem>>, %arg9: memref<1x128xf32, #tpu.memory_space<vmem>>, %arg10: memref<8x128xf32, #tpu.memory_space<vmem>>) attributes {dimension_semantics = [#tpu.dimension_semantics<parallel>], iteration_bounds = array<i64: 1>, scalar_prefetch = 0 : i64, scratch_operands = 0 : i64, tpu.core_type = #tpu.core_type<tc>, window_params = [{transform_indices = @transform_0, window_bounds = array<i64: 8, 128>}, {pipeline_mode = #tpu.pipeline_mode<synchronous>, transform_indices = @transform_1, window_bounds = array<i64: 128, 384>}, {pipeline_mode = #tpu.pipeline_mode<synchronous>, transform_indices = @transform_2, window_bounds = array<i64: 1, 384>}, {pipeline_mode = #tpu.pipeline_mode<synchronous>, transform_indices = @transform_3, window_bounds = array<i64: 384, 384>}, {pipeline_mode = #tpu.pipeline_mode<synchronous>, transform_indices = @transform_4, window_bounds = array<i64: 1, 384>}, {pipeline_mode = #tpu.pipeline_mode<synchronous>, transform_indices = @transform_5, window_bounds = array<i64: 384, 384>}, {pipeline_mode = #tpu.pipeline_mode<synchronous>, transform_indices = @transform_6, window_bounds = array<i64: 1, 384>}, {pipeline_mode = #tpu.pipeline_mode<synchronous>, transform_indices = @transform_7, window_bounds = array<i64: 384, 128>}, {pipeline_mode = #tpu.pipeline_mode<synchronous>, transform_indices = @transform_8, window_bounds = array<i64: 1, 128>}, {transform_indices = @transform_9, window_bounds = array<i64: 8, 128>}]} {
    %c0 = arith.constant 0 : index
    %c0_0 = arith.constant 0 : index
    %0 = vector.load %arg1[%c0, %c0_0] : memref<8x128xf32, #tpu.memory_space<vmem>>, vector<8x128xf32>
    %c0_1 = arith.constant 0 : index
    %c0_2 = arith.constant 0 : index
    %1 = vector.load %arg2[%c0_1, %c0_2] : memref<128x384xf32, #tpu.memory_space<vmem>>, vector<128x384xf32>
    %cst = arith.constant dense<0.000000e+00> : vector<8x384xf32>
    %2 = tpu.matmul %0, %1, %cst {dimension_numbers = #tpu.dot_dimension_numbers<[1], [0], [0], [1], [0, 0, 1, 1], [], []>} : vector<8x128xf32>, vector<128x384xf32>, vector<8x384xf32> -> vector<8x384xf32>
    %c0_3 = arith.constant 0 : index
    %c0_4 = arith.constant 0 : index
    %3 = vector.load %arg3[%c0_3, %c0_4] : memref<1x384xf32, #tpu.memory_space<vmem>>, vector<1x384xf32>
    %4 = vector.broadcast %3 : vector<1x384xf32> to vector<8x384xf32>
    %5 = arith.addf %2, %4 : vector<8x384xf32>
    %cst_5 = arith.constant 0.000000e+00 : f32
    %6 = vector.broadcast %cst_5 : f32 to vector<8x384xf32>
    %7 = arith.maximumf %5, %6 : vector<8x384xf32>
    %c0_6 = arith.constant 0 : index
    %c0_7 = arith.constant 0 : index
    %8 = vector.load %arg4[%c0_6, %c0_7] : memref<384x384xf32, #tpu.memory_space<vmem>>, vector<384x384xf32>
    %cst_8 = arith.constant dense<0.000000e+00> : vector<8x384xf32>
    %9 = tpu.matmul %7, %8, %cst_8 {dimension_numbers = #tpu.dot_dimension_numbers<[1], [0], [0], [1], [0, 0, 1, 1], [], []>} : vector<8x384xf32>, vector<384x384xf32>, vector<8x384xf32> -> vector<8x384xf32>
    %c0_9 = arith.constant 0 : index
    %c0_10 = arith.constant 0 : index
    %10 = vector.load %arg5[%c0_9, %c0_10] : memref<1x384xf32, #tpu.memory_space<vmem>>, vector<1x384xf32>
    %11 = vector.broadcast %10 : vector<1x384xf32> to vector<8x384xf32>
    %12 = arith.addf %9, %11 : vector<8x384xf32>
    %cst_11 = arith.constant 0.000000e+00 : f32
    %13 = vector.broadcast %cst_11 : f32 to vector<8x384xf32>
    %14 = arith.maximumf %12, %13 : vector<8x384xf32>
    %c0_12 = arith.constant 0 : index
    %c0_13 = arith.constant 0 : index
    %15 = vector.load %arg6[%c0_12, %c0_13] : memref<384x384xf32, #tpu.memory_space<vmem>>, vector<384x384xf32>
    %cst_14 = arith.constant dense<0.000000e+00> : vector<8x384xf32>
    %16 = tpu.matmul %14, %15, %cst_14 {dimension_numbers = #tpu.dot_dimension_numbers<[1], [0], [0], [1], [0, 0, 1, 1], [], []>} : vector<8x384xf32>, vector<384x384xf32>, vector<8x384xf32> -> vector<8x384xf32>
    %c0_15 = arith.constant 0 : index
    %c0_16 = arith.constant 0 : index
    %17 = vector.load %arg7[%c0_15, %c0_16] : memref<1x384xf32, #tpu.memory_space<vmem>>, vector<1x384xf32>
    %18 = vector.broadcast %17 : vector<1x384xf32> to vector<8x384xf32>
    %19 = arith.addf %16, %18 : vector<8x384xf32>
    %cst_17 = arith.constant 0.000000e+00 : f32
    %20 = vector.broadcast %cst_17 : f32 to vector<8x384xf32>
    %21 = arith.maximumf %19, %20 : vector<8x384xf32>
    %c0_18 = arith.constant 0 : index
    %c0_19 = arith.constant 0 : index
    %22 = vector.load %arg8[%c0_18, %c0_19] : memref<384x128xf32, #tpu.memory_space<vmem>>, vector<384x128xf32>
    %cst_20 = arith.constant dense<0.000000e+00> : vector<8x128xf32>
    %23 = tpu.matmul %21, %22, %cst_20 {dimension_numbers = #tpu.dot_dimension_numbers<[1], [0], [0], [1], [0, 0, 1, 1], [], []>} : vector<8x384xf32>, vector<384x128xf32>, vector<8x128xf32> -> vector<8x128xf32>
    %c0_21 = arith.constant 0 : index
    %c0_22 = arith.constant 0 : index
    %24 = vector.load %arg9[%c0_21, %c0_22] : memref<1x128xf32, #tpu.memory_space<vmem>>, vector<1x128xf32>
    %25 = vector.broadcast %24 : vector<1x128xf32> to vector<8x128xf32>
    %26 = arith.addf %23, %25 : vector<8x128xf32>
    %cst_23 = arith.constant 0.000000e+00 : f32
    %27 = vector.broadcast %cst_23 : f32 to vector<8x128xf32>
    %28 = arith.maximumf %26, %27 : vector<8x128xf32>
    %cst_24 = arith.constant 1.000000e+00 : f32
    %29 = vector.broadcast %cst_24 : f32 to vector<8x128xf32>
    %30 = arith.minimumf %28, %29 : vector<8x128xf32>
    %c0_25 = arith.constant 0 : index
    %c0_26 = arith.constant 0 : index
    %31 = vector.load %arg10[%c0_25, %c0_26] : memref<8x128xf32, #tpu.memory_space<vmem>>, vector<8x128xf32>
    tpu.vector_store %arg10[%c0_25, %c0_26], %30 {strides = array<i32>} : memref<8x128xf32, #tpu.memory_space<vmem>>, vector<8x128xf32>,
    return
  }
  func.func @transform_0(%arg0: i32) -> (i32, i32) {
    %c0_i32 = arith.constant 0 : i32
    %c0_i32_0 = arith.constant 0 : i32
    return %arg0, %c0_i32 : i32, i32
  }
  func.func @transform_1(%arg0: i32) -> (i32, i32) {
    %c0_i32 = arith.constant 0 : i32
    %c0_i32_0 = arith.constant 0 : i32
    %c0_i32_1 = arith.constant 0 : i32
    return %c0_i32, %c0_i32_0 : i32, i32
  }
  func.func @transform_2(%arg0: i32) -> (i32, i32) {
    %c0_i32 = arith.constant 0 : i32
    %c0_i32_0 = arith.constant 0 : i32
    %c0_i32_1 = arith.constant 0 : i32
    return %c0_i32, %c0_i32_0 : i32, i32
  }
  func.func @transform_3(%arg0: i32) -> (i32, i32) {
    %c0_i32 = arith.constant 0 : i32
    %c0_i32_0 = arith.constant 0 : i32
    %c0_i32_1 = arith.constant 0 : i32
    return %c0_i32, %c0_i32_0 : i32, i32
  }
  func.func @transform_4(%arg0: i32) -> (i32, i32) {
    %c0_i32 = arith.constant 0 : i32
    %c0_i32_0 = arith.constant 0 : i32
    %c0_i32_1 = arith.constant 0 : i32
    return %c0_i32, %c0_i32_0 : i32, i32
  }
  func.func @transform_5(%arg0: i32) -> (i32, i32) {
    %c0_i32 = arith.constant 0 : i32
    %c0_i32_0 = arith.constant 0 : i32
    %c0_i32_1 = arith.constant 0 : i32
    return %c0_i32, %c0_i32_0 : i32, i32
  }
  func.func @transform_6(%arg0: i32) -> (i32, i32) {
    %c0_i32 = arith.constant 0 : i32
    %c0_i32_0 = arith.constant 0 : i32
    %c0_i32_1 = arith.constant 0 : i32
    return %c0_i32, %c0_i32_0 : i32, i32
  }
  func.func @transform_7(%arg0: i32) -> (i32, i32) {
    %c0_i32 = arith.constant 0 : i32
    %c0_i32_0 = arith.constant 0 : i32
    %c0_i32_1 = arith.constant 0 : i32
    return %c0_i32, %c0_i32_0 : i32, i32
  }
  func.func @transform_8(%arg0: i32) -> (i32, i32) {
    %c0_i32 = arith.constant 0 : i32
    %c0_i32_0 = arith.constant 0 : i32
    %c0_i32_1 = arith.constant 0 : i32
    return %c0_i32, %c0_i32_0 : i32, i32
  }
  func.func @transform_9(%arg0: i32) -> (i32, i32) {
    %c0_i32 = arith.constant 0 : i32
    %c0_i32_0 = arith.constant 0 : i32
    return %arg0, %c0_i32 : i32, i32
  }
}

</mosaic_0001>

<llo_original>
// kernel: tpu_custom_call.1
$region0: #{tpu_custom_call.1}
  #allocation0 [shape = 'u32[]', space=smem, size = 0x4, offset = 0x4, fixed_abs, tag = 'smem constant byte address 0x4 - core index']
  #allocation1 [shape = 'u32[72,128]{1,0:T(1,128)}', space=vmem, size = 0x9000, scoped, tag = 'internal scratch']
  %s0 = inlined_call_operand.hbm [shape: f32[8,128], index: 0, kind: input, shape index: {}]
  %s1 = inlined_call_operand.hbm [shape: f32[128,384], index: 1, kind: input, shape index: {}]
  %s2 = inlined_call_operand.hbm [shape: f32[1,384], index: 2, kind: input, shape index: {}]
  %s3 = inlined_call_operand.hbm [shape: f32[384,384], index: 3, kind: input, shape index: {}]
  %s4 = inlined_call_operand.vmem [shape: f32[1,384], index: 4, kind: input, shape index: {}]
  %s5 = inlined_call_operand.hbm [shape: f32[384,384], index: 5, kind: input, shape index: {}]
  %s6 = inlined_call_operand.hbm [shape: f32[1,384], index: 6, kind: input, shape index: {}]
  %s7 = inlined_call_operand.hbm [shape: f32[384,128], index: 7, kind: input, shape index: {}]
  %s8 = inlined_call_operand.vmem [shape: f32[1,128], index: 8, kind: input, shape index: {}]
  %s9 = inlined_call_operand.hbm [shape: f32[8,128], index: 9, kind: output, shape index: {}]
  %s10 = sld [smem:[#allocation0]]
  $region74: #{tpu_custom_call.1} parent=0
    _
  %s12 = ssub.s32 1, %s10
  %s13 = scalar_select 0, %s12, %s10
  $region1: #{tpu_custom_call.1} parent=0
    #allocation2 [shape = 'u8[4096]{0}', space=vmem, size = 0x1000, scoped, tag = 'input window, operand 0, single buffered']
    #allocation3 [shape = 's32[1]{0}', space=sflag, size = 0x4, scoped, tag = 'scoped memory for tpu_custom_call.1']
    #allocation4 [shape = 's32[1]{0}', space=sflag, size = 0x4, scoped, tag = 'scoped memory for tpu_custom_call.1']
    #allocation5 [shape = 'u8[196608]{0}', space=vmem, size = 0x30000, scoped, tag = 'input window, operand 1, single buffered']
    #allocation6 [shape = 's32[1]{0}', space=sflag, size = 0x4, scoped, tag = 'scoped memory for tpu_custom_call.1']
    #allocation7 [shape = 'u8[1536]{0}', space=vmem, size = 0x800, scoped, tag = 'input window, operand 2, single buffered']
    #allocation8 [shape = 'u8[589824]{0}', space=vmem, size = 0x90000, scoped, tag = 'input window, operand 3, single buffered']
    #allocation9 [shape = 's32[1]{0}', space=sflag, size = 0x4, scoped, tag = 'scoped memory for tpu_custom_call.1']
    #allocation10 [shape = 'u8[589824]{0}', space=vmem, size = 0x90000, scoped, tag = 'input window, operand 5, single buffered']
    #allocation11 [shape = 'u8[1536]{0}', space=vmem, size = 0x800, scoped, tag = 'input window, operand 6, single buffered']
    #allocation12 [shape = 's32[1]{0}', space=sflag, size = 0x4, scoped, tag = 'scoped memory for tpu_custom_call.1']
    #allocation13 [shape = 'u8[196608]{0}', space=vmem, size = 0x30000, scoped, tag = 'input window, operand 7, single buffered']
    #allocation14 [shape = 'u8[4096]{0}', space=vmem, size = 0x1000, scoped, tag = 'output window, operand 0, single buffered']
    %14 = vsyncpa [#allocation3], 0
    %15 = vsyncpa [#allocation6], 0
    %16 = vsyncpa [#allocation9], 0
    %17 = vsyncpa [#allocation12], 0
    %18 = vsyncpa [#allocation4], 0
    // Predicated region
    $region2: #{tpu_custom_call.1} parent=1 // pred_check
      _
    $region3: #{tpu_custom_call.1} parent=1 // pred_check_branch
      %20 = sbr.rel (0) target = $region5
    $region4: #{tpu_custom_call.1} parent=1 // pred_region
      %22 = vsyncadd [#allocation3], 0
      %s24 = sshll.u32 %s0, 4
      %s25 = int_to_ptr.hbm [resolvable:$true] %s24
      %s26 = sshll.u32 [#allocation2], 4
      %s27 = int_to_ptr.vmem [resolvable:$true] %s26
      %29 = dma.hbm_to_vmem [thread:$0]  %s25, 128, %s27, [#allocation3]
    $region5: #{tpu_custom_call.1} parent=1 // pred_fallthru
      _
    // Predicated region
    $region6: #{tpu_custom_call.1} parent=1 // pred_check
      _
    $region7: #{tpu_custom_call.1} parent=1 // pred_check_branch
      %31 = sbr.rel (0) target = $region9
    $region8: #{tpu_custom_call.1} parent=1 // pred_region
      %33 = vsyncadd [#allocation6], 0
      %s34 = sshll.u32 %s1, 4
      %s35 = int_to_ptr.hbm [resolvable:$true] %s34
      %s36 = sshll.u32 [#allocation5], 4
      %s37 = int_to_ptr.vmem [resolvable:$true] %s36
      %42 = dma.hbm_to_vmem [thread:$0]  %s35, 6144, %s37, [#allocation6], 384, 384, 24
    $region9: #{tpu_custom_call.1} parent=1 // pred_fallthru
      _
    // Predicated region
    $region10: #{tpu_custom_call.1} parent=1 // pred_check
      _
    $region11: #{tpu_custom_call.1} parent=1 // pred_check_branch
      %44 = sbr.rel (0) target = $region13
    $region12: #{tpu_custom_call.1} parent=1 // pred_region
      %46 = vsyncadd [#allocation6], 0
      %s48 = sshll.u32 %s2, 4
      %s49 = int_to_ptr.hbm [resolvable:$true] %s48
      %s50 = sshll.u32 [#allocation7], 4
      %s51 = int_to_ptr.vmem [resolvable:$true] %s50
      %53 = dma.hbm_to_vmem [thread:$0]  %s49, 48, %s51, [#allocation6]
    $region13: #{tpu_custom_call.1} parent=1 // pred_fallthru
      _
    // Predicated region
    $region14: #{tpu_custom_call.1} parent=1 // pred_check
      _
    $region15: #{tpu_custom_call.1} parent=1 // pred_check_branch
      %55 = sbr.rel (0) target = $region17
    $region16: #{tpu_custom_call.1} parent=1 // pred_region
      %57 = vsyncadd [#allocation9], 0
      %s58 = sshll.u32 %s3, 4
      %s59 = int_to_ptr.hbm [resolvable:$true] %s58
      %s60 = sshll.u32 [#allocation8], 4
      %s61 = int_to_ptr.vmem [resolvable:$true] %s60
      %66 = dma.hbm_to_vmem [thread:$0]  %s59, 18432, %s61, [#allocation9], 384, 384, 24
    $region17: #{tpu_custom_call.1} parent=1 // pred_fallthru
      _
    // Predicated region
    $region18: #{tpu_custom_call.1} parent=1 // pred_check
      _
    $region19: #{tpu_custom_call.1} parent=1 // pred_check_branch
      %68 = sbr.rel (0) target = $region21
    $region20: #{tpu_custom_call.1} parent=1 // pred_region
      _
    $region21: #{tpu_custom_call.1} parent=1 // pred_fallthru
      _
    // Predicated region
    $region22: #{tpu_custom_call.1} parent=1 // pred_check
      _
    $region23: #{tpu_custom_call.1} parent=1 // pred_check_branch
      %70 = sbr.rel (0) target = $region25
    $region24: #{tpu_custom_call.1} parent=1 // pred_region
      %72 = vsyncadd [#allocation9], 0
      %s73 = sshll.u32 %s5, 4
      %s74 = int_to_ptr.hbm [resolvable:$true] %s73
      %s75 = sshll.u32 [#allocation10], 4
      %s76 = int_to_ptr.vmem [resolvable:$true] %s75
      %81 = dma.hbm_to_vmem [thread:$0]  %s74, 18432, %s76, [#allocation9], 384, 384, 24
    $region25: #{tpu_custom_call.1} parent=1 // pred_fallthru
      _
    // Predicated region
    $region26: #{tpu_custom_call.1} parent=1 // pred_check
      _
    $region27: #{tpu_custom_call.1} parent=1 // pred_check_branch
      %83 = sbr.rel (0) target = $region29
    $region28: #{tpu_custom_call.1} parent=1 // pred_region
      %85 = vsyncadd [#allocation12], 0
      %s87 = sshll.u32 %s6, 4
      %s88 = int_to_ptr.hbm [resolvable:$true] %s87
      %s89 = sshll.u32 [#allocation11], 4
      %s90 = int_to_ptr.vmem [resolvable:$true] %s89
      %92 = dma.hbm_to_vmem [thread:$0]  %s88, 48, %s90, [#allocation12]
    $region29: #{tpu_custom_call.1} parent=1 // pred_fallthru
      _
    // Predicated region
    $region30: #{tpu_custom_call.1} parent=1 // pred_check
      _
    $region31: #{tpu_custom_call.1} parent=1 // pred_check_branch
      %94 = sbr.rel (0) target = $region33
    $region32: #{tpu_custom_call.1} parent=1 // pred_region
      %96 = vsyncadd [#allocation12], 0
      %s97 = sshll.u32 %s7, 4
      %s98 = int_to_ptr.hbm [resolvable:$true] %s97
      %s99 = sshll.u32 [#allocation13], 4
      %s100 = int_to_ptr.vmem [resolvable:$true] %s99
      %105 = dma.hbm_to_vmem [thread:$0]  %s98, 6144, %s100, [#allocation12], 128, 128, 8
    $region33: #{tpu_custom_call.1} parent=1 // pred_fallthru
      _
    // Predicated region
    $region34: #{tpu_custom_call.1} parent=1 // pred_check
      _
    $region35: #{tpu_custom_call.1} parent=1 // pred_check_branch
      %107 = sbr.rel (0) target = $region37
    $region36: #{tpu_custom_call.1} parent=1 // pred_region
      _
    $region37: #{tpu_custom_call.1} parent=1 // pred_fallthru
      _
    // Predicated region
    $region38: #{tpu_custom_call.1} parent=1 // pred_check
      _
    $region39: #{tpu_custom_call.1} parent=1 // pred_check_branch
      %109 = sbr.rel (0) target = $region41
    $region40: #{tpu_custom_call.1} parent=1 // pred_region
      %111 = dma.done [#allocation3], 128
    $region41: #{tpu_custom_call.1} parent=1 // pred_fallthru
      _
    // Predicated region
    $region42: #{tpu_custom_call.1} parent=1 // pred_check
      _
    $region43: #{tpu_custom_call.1} parent=1 // pred_check_branch
      %113 = sbr.rel (0) target = $region45
    $region44: #{tpu_custom_call.1} parent=1 // pred_region
      %115 = dma.done [#allocation6], 6144
    $region45: #{tpu_custom_call.1} parent=1 // pred_fallthru
      _
    // Predicated region
    $region46: #{tpu_custom_call.1} parent=1 // pred_check
      _
    $region47: #{tpu_custom_call.1} parent=1 // pred_check_branch
      %117 = sbr.rel (0) target = $region49
    $region48: #{tpu_custom_call.1} parent=1 // pred_region
      %119 = dma.done [#allocation6], 48
    $region49: #{tpu_custom_call.1} parent=1 // pred_fallthru
      _
    // Predicated region
    $region50: #{tpu_custom_call.1} parent=1 // pred_check
      _
    $region51: #{tpu_custom_call.1} parent=1 // pred_check_branch
      %121 = sbr.rel (0) target = $region53
    $region52: #{tpu_custom_call.1} parent=1 // pred_region
      %123 = dma.done [#allocation9], 18432
    $region53: #{tpu_custom_call.1} parent=1 // pred_fallthru
      _
    // Predicated region
    $region54: #{tpu_custom_call.1} parent=1 // pred_check
      _
    $region55: #{tpu_custom_call.1} parent=1 // pred_check_branch
      %125 = sbr.rel (0) target = $region57
    $region56: #{tpu_custom_call.1} parent=1 // pred_region
      %127 = dma.done [#allocation9], 18432
    $region57: #{tpu_custom_call.1} parent=1 // pred_fallthru
      _
    // Predicated region
    $region58: #{tpu_custom_call.1} parent=1 // pred_check
      _
    $region59: #{tpu_custom_call.1} parent=1 // pred_check_branch
      %129 = sbr.rel (0) target = $region61
    $region60: #{tpu_custom_call.1} parent=1 // pred_region
      %131 = dma.done [#allocation12], 48
    $region61: #{tpu_custom_call.1} parent=1 // pred_fallthru
      _
    // Predicated region
    $region62: #{tpu_custom_call.1} parent=1 // pred_check
      _
    $region63: #{tpu_custom_call.1} parent=1 // pred_check_branch
      %133 = sbr.rel (0) target = $region65
    $region64: #{tpu_custom_call.1} parent=1 // pred_region
      %135 = dma.done [#allocation12], 6144
    $region65: #{tpu_custom_call.1} parent=1 // pred_fallthru
      _
    %v136 = vld [vmem:[#allocation2] sm:$0xff]
    %v137 = vld [vmem:[#allocation5] sm:$0xff]
    %v138 = vld [vmem:[#allocation5 + $0x8] sm:$0xff]
    %v139 = vld [vmem:[#allocation5 + $0x10] sm:$0xff]
    %v140 = vld [vmem:[#allocation5 + $0x18] sm:$0xff]
    %v141 = vld [vmem:[#allocation5 + $0x20] sm:$0xff]
    %v142 = vld [vmem:[#allocation5 + $0x28] sm:$0xff]
    %v143 = vld [vmem:[#allocation5 + $0x30] sm:$0xff]
    %v144 = vld [vmem:[#allocation5 + $0x38] sm:$0xff]
    %v145 = vld [vmem:[#allocation5 + $0x40] sm:$0xff]
    %v146 = vld [vmem:[#allocation5 + $0x48] sm:$0xff]
    %v147 = vld [vmem:[#allocation5 + $0x50] sm:$0xff]
    %v148 = vld [vmem:[#allocation5 + $0x58] sm:$0xff]
    %v149 = vld [vmem:[#allocation5 + $0x60] sm:$0xff]
    %v150 = vld [vmem:[#allocation5 + $0x68] sm:$0xff]
    %v151 = vld [vmem:[#allocation5 + $0x70] sm:$0xff]
    %v152 = vld [vmem:[#allocation5 + $0x78] sm:$0xff]
    %v153 = vld [vmem:[#allocation5 + $0x80] sm:$0xff]
    %v154 = vld [vmem:[#allocation5 + $0x88] sm:$0xff]
    %v155 = vld [vmem:[#allocation5 + $0x90] sm:$0xff]
    %v156 = vld [vmem:[#allocation5 + $0x98] sm:$0xff]
    %v157 = vld [vmem:[#allocation5 + $0xa0] sm:$0xff]
    %v158 = vld [vmem:[#allocation5 + $0xa8] sm:$0xff]
    %v159 = vld [vmem:[#allocation5 + $0xb0] sm:$0xff]
    %v160 = vld [vmem:[#allocation5 + $0xb8] sm:$0xff]
    %v161 = vld [vmem:[#allocation5 + $0xc0] sm:$0xff]
    %v162 = vld [vmem:[#allocation5 + $0xc8] sm:$0xff]
    %v163 = vld [vmem:[#allocation5 + $0xd0] sm:$0xff]
    %v164 = vld [vmem:[#allocation5 + $0xd8] sm:$0xff]
    %v165 = vld [vmem:[#allocation5 + $0xe0] sm:$0xff]
    %v166 = vld [vmem:[#allocation5 + $0xe8] sm:$0xff]
    %v167 = vld [vmem:[#allocation5 + $0xf0] sm:$0xff]
    %v168 = vld [vmem:[#allocation5 + $0xf8] sm:$0xff]
    %v169 = vld [vmem:[#allocation5 + $0x100] sm:$0xff]
    %v170 = vld [vmem:[#allocation5 + $0x108] sm:$0xff]
    %v171 = vld [vmem:[#allocation5 + $0x110] sm:$0xff]
    %v172 = vld [vmem:[#allocation5 + $0x118] sm:$0xff]
    %v173 = vld [vmem:[#allocation5 + $0x120] sm:$0xff]
    %v174 = vld [vmem:[#allocation5 + $0x128] sm:$0xff]
    %v175 = vld [vmem:[#allocation5 + $0x130] sm:$0xff]
    %v176 = vld [vmem:[#allocation5 + $0x138] sm:$0xff]
    %v177 = vld [vmem:[#allocation5 + $0x140] sm:$0xff]
    %v178 = vld [vmem:[#allocation5 + $0x148] sm:$0xff]
    %v179 = vld [vmem:[#allocation5 + $0x150] sm:$0xff]
    %v180 = vld [vmem:[#allocation5 + $0x158] sm:$0xff]
    %v181 = vld [vmem:[#allocation5 + $0x160] sm:$0xff]
    %v182 = vld [vmem:[#allocation5 + $0x168] sm:$0xff]
    %v183 = vld [vmem:[#allocation5 + $0x170] sm:$0xff]
    %v184 = vld [vmem:[#allocation5 + $0x178] sm:$0xff]
    %v185 = vld [vmem:[#allocation7] sm:$0x7]
    %v187 = vperm.slane %v185, 0
    %v188 = vperm.slane %v185, 1
    %v189 = vperm.slane %v185, 2
    %193 = vmatpush.msra.mxu0 %v182
    %194 = vmatpush.msra.mxu0 %v179
    %195 = vmatpush.msra.mxu0 %v176
    %196 = vmatpush.msra.mxu0 %v173
    %197 = vmatpush.msra.mxu0 %v170
    %198 = vmatpush.msra.mxu0 %v167
    %199 = vmatpush.msra.mxu0 %v164
    %200 = vmatpush.msra.mxu0 %v161
    %201 = vmatpush.msra.mxu0 %v158
    %202 = vmatpush.msra.mxu0 %v155
    %203 = vmatpush.msra.mxu0 %v152
    %204 = vmatpush.msra.mxu0 %v149
    %205 = vmatpush.msra.mxu0 %v146
    %206 = vmatpush.msra.mxu0 %v143
    %207 = vmatpush.msra.mxu0 %v140
    %208 = vmatpush.msra.mxu0 %v137
    %209 = vmatmul.f32.gmra.mxu0 %v136
    %v210 = vpop.f32.mrf.mxu0
    %v211 = vadd.f32 %v187, %v210
    %212 = vdwg.mxu0
    %213 = vmatpush.msra.mxu0 %v183
    %214 = vmatpush.msra.mxu0 %v180
    %215 = vmatpush.msra.mxu0 %v177
    %216 = vmatpush.msra.mxu0 %v174
    %217 = vmatpush.msra.mxu0 %v171
    %218 = vmatpush.msra.mxu0 %v168
    %219 = vmatpush.msra.mxu0 %v165
    %220 = vmatpush.msra.mxu0 %v162
    %221 = vmatpush.msra.mxu0 %v159
    %222 = vmatpush.msra.mxu0 %v156
    %223 = vmatpush.msra.mxu0 %v153
    %224 = vmatpush.msra.mxu0 %v150
    %225 = vmatpush.msra.mxu0 %v147
    %226 = vmatpush.msra.mxu0 %v144
    %227 = vmatpush.msra.mxu0 %v141
    %228 = vmatpush.msra.mxu0 %v138
    %229 = vmatmul.f32.gmra.mxu0 %v136
    %v230 = vpop.f32.mrf.mxu0
    %v231 = vadd.f32 %v188, %v230
    %232 = vdwg.mxu0
    %233 = vmatpush.msra.mxu0 %v184
    %234 = vmatpush.msra.mxu0 %v181
    %235 = vmatpush.msra.mxu0 %v178
    %236 = vmatpush.msra.mxu0 %v175
    %237 = vmatpush.msra.mxu0 %v172
    %238 = vmatpush.msra.mxu0 %v169
    %239 = vmatpush.msra.mxu0 %v166
    %240 = vmatpush.msra.mxu0 %v163
    %241 = vmatpush.msra.mxu0 %v160
    %242 = vmatpush.msra.mxu0 %v157
    %243 = vmatpush.msra.mxu0 %v154
    %244 = vmatpush.msra.mxu0 %v151
    %245 = vmatpush.msra.mxu0 %v148
    %246 = vmatpush.msra.mxu0 %v145
    %247 = vmatpush.msra.mxu0 %v142
    %248 = vmatpush.msra.mxu0 %v139
    %249 = vmatmul.f32.gmra.mxu0 %v136
    %v250 = vpop.f32.mrf.mxu0
    %v251 = vadd.f32 %v189, %v250
    %252 = vdwg.mxu0
    %v253 = vmax.f32 %v211, 0.0
    %v254 = vmax.f32 %v231, 0.0
    %v255 = vmax.f32 %v251, 0.0
    %v256 = vld [vmem:[#allocation8] sm:$0xff]
    %v257 = vld [vmem:[#allocation8 + $0x8] sm:$0xff]
    %v258 = vld [vmem:[#allocation8 + $0x10] sm:$0xff]
    %v259 = vld [vmem:[#allocation8 + $0x18] sm:$0xff]
    %v260 = vld [vmem:[#allocation8 + $0x20] sm:$0xff]
    %v261 = vld [vmem:[#allocation8 + $0x28] sm:$0xff]
    %v262 = vld [vmem:[#allocation8 + $0x30] sm:$0xff]
    %v263 = vld [vmem:[#allocation8 + $0x38] sm:$0xff]
    %v264 = vld [vmem:[#allocation8 + $0x40] sm:$0xff]
    %v265 = vld [vmem:[#allocation8 + $0x48] sm:$0xff]
    %v266 = vld [vmem:[#allocation8 + $0x50] sm:$0xff]
    %v267 = vld [vmem:[#allocation8 + $0x58] sm:$0xff]
    %v268 = vld [vmem:[#allocation8 + $0x60] sm:$0xff]
    %v269 = vld [vmem:[#allocation8 + $0x68] sm:$0xff]
    %v270 = vld [vmem:[#allocation8 + $0x70] sm:$0xff]
    %v271 = vld [vmem:[#allocation8 + $0x78] sm:$0xff]
    %v272 = vld [vmem:[#allocation8 + $0x80] sm:$0xff]
    %v273 = vld [vmem:[#allocation8 + $0x88] sm:$0xff]
    %v274 = vld [vmem:[#allocation8 + $0x90] sm:$0xff]
    %v275 = vld [vmem:[#allocation8 + $0x98] sm:$0xff]
    %v276 = vld [vmem:[#allocation8 + $0xa0] sm:$0xff]
    %v277 = vld [vmem:[#allocation8 + $0xa8] sm:$0xff]
    %v278 = vld [vmem:[#allocation8 + $0xb0] sm:$0xff]
    %v279 = vld [vmem:[#allocation8 + $0xb8] sm:$0xff]
    %v280 = vld [vmem:[#allocation8 + $0xc0] sm:$0xff]
    %v281 = vld [vmem:[#allocation8 + $0xc8] sm:$0xff]
    %v282 = vld [vmem:[#allocation8 + $0xd0] sm:$0xff]
    %v283 = vld [vmem:[#allocation8 + $0xd8] sm:$0xff]
    %v284 = vld [vmem:[#allocation8 + $0xe0] sm:$0xff]
    %v285 = vld [vmem:[#allocation8 + $0xe8] sm:$0xff]
    %v286 = vld [vmem:[#allocation8 + $0xf0] sm:$0xff]
    %v287 = vld [vmem:[#allocation8 + $0xf8] sm:$0xff]
    %v288 = vld [vmem:[#allocation8 + $0x100] sm:$0xff]
    %v289 = vld [vmem:[#allocation8 + $0x108] sm:$0xff]
    %v290 = vld [vmem:[#allocation8 + $0x110] sm:$0xff]
    %v291 = vld [vmem:[#allocation8 + $0x118] sm:$0xff]
    %v292 = vld [vmem:[#allocation8 + $0x120] sm:$0xff]
    %v293 = vld [vmem:[#allocation8 + $0x128] sm:$0xff]
    %v294 = vld [vmem:[#allocation8 + $0x130] sm:$0xff]
    %v295 = vld [vmem:[#allocation8 + $0x138] sm:$0xff]
    %v296 = vld [vmem:[#allocation8 + $0x140] sm:$0xff]
    %v297 = vld [vmem:[#allocation8 + $0x148] sm:$0xff]
    %v298 = vld [vmem:[#allocation8 + $0x150] sm:$0xff]
    %v299 = vld [vmem:[#allocation8 + $0x158] sm:$0xff]
    %v300 = vld [vmem:[#allocation8 + $0x160] sm:$0xff]
    %v301 = vld [vmem:[#allocation8 + $0x168] sm:$0xff]
    %v302 = vld [vmem:[#allocation8 + $0x170] sm:$0xff]
    %v303 = vld [vmem:[#allocation8 + $0x178] sm:$0xff]
    %v304 = vld [vmem:[#allocation8 + $0x180] sm:$0xff]
    %v305 = vld [vmem:[#allocation8 + $0x188] sm:$0xff]
    %v306 = vld [vmem:[#allocation8 + $0x190] sm:$0xff]
    %v307 = vld [vmem:[#allocation8 + $0x198] sm:$0xff]
    %v308 = vld [vmem:[#allocation8 + $0x1a0] sm:$0xff]
    %v309 = vld [vmem:[#allocation8 + $0x1a8] sm:$0xff]
    %v310 = vld [vmem:[#allocation8 + $0x1b0] sm:$0xff]
    %v311 = vld [vmem:[#allocation8 + $0x1b8] sm:$0xff]
    %v312 = vld [vmem:[#allocation8 + $0x1c0] sm:$0xff]
    %v313 = vld [vmem:[#allocation8 + $0x1c8] sm:$0xff]
    %v314 = vld [vmem:[#allocation8 + $0x1d0] sm:$0xff]
    %v315 = vld [vmem:[#allocation8 + $0x1d8] sm:$0xff]
    %v316 = vld [vmem:[#allocation8 + $0x1e0] sm:$0xff]
    %v317 = vld [vmem:[#allocation8 + $0x1e8] sm:$0xff]
    %v318 = vld [vmem:[#allocation8 + $0x1f0] sm:$0xff]
    %v319 = vld [vmem:[#allocation8 + $0x1f8] sm:$0xff]
    %v320 = vld [vmem:[#allocation8 + $0x200] sm:$0xff]
    %v321 = vld [vmem:[#allocation8 + $0x208] sm:$0xff]
    %v322 = vld [vmem:[#allocation8 + $0x210] sm:$0xff]
    %v323 = vld [vmem:[#allocation8 + $0x218] sm:$0xff]
    %v324 = vld [vmem:[#allocation8 + $0x220] sm:$0xff]
    %v325 = vld [vmem:[#allocation8 + $0x228] sm:$0xff]
    %v326 = vld [vmem:[#allocation8 + $0x230] sm:$0xff]
    %v327 = vld [vmem:[#allocation8 + $0x238] sm:$0xff]
    %v328 = vld [vmem:[#allocation8 + $0x240] sm:$0xff]
    %v329 = vld [vmem:[#allocation8 + $0x248] sm:$0xff]
    %v330 = vld [vmem:[#allocation8 + $0x250] sm:$0xff]
    %v331 = vld [vmem:[#allocation8 + $0x258] sm:$0xff]
    %v332 = vld [vmem:[#allocation8 + $0x260] sm:$0xff]
    %v333 = vld [vmem:[#allocation8 + $0x268] sm:$0xff]
    %v334 = vld [vmem:[#allocation8 + $0x270] sm:$0xff]
    %v335 = vld [vmem:[#allocation8 + $0x278] sm:$0xff]
    %v336 = vld [vmem:[#allocation8 + $0x280] sm:$0xff]
    %v337 = vld [vmem:[#allocation8 + $0x288] sm:$0xff]
    %v338 = vld [vmem:[#allocation8 + $0x290] sm:$0xff]
    %v339 = vld [vmem:[#allocation8 + $0x298] sm:$0xff]
    %v340 = vld [vmem:[#allocation8 + $0x2a0] sm:$0xff]
    %v341 = vld [vmem:[#allocation8 + $0x2a8] sm:$0xff]
    %v342 = vld [vmem:[#allocation8 + $0x2b0] sm:$0xff]
    %v343 = vld [vmem:[#allocation8 + $0x2b8] sm:$0xff]
    %v344 = vld [vmem:[#allocation8 + $0x2c0] sm:$0xff]
    %v345 = vld [vmem:[#allocation8 + $0x2c8] sm:$0xff]
    %v346 = vld [vmem:[#allocation8 + $0x2d0] sm:$0xff]
    %v347 = vld [vmem:[#allocation8 + $0x2d8] sm:$0xff]
    %v348 = vld [vmem:[#allocation8 + $0x2e0] sm:$0xff]
    %v349 = vld [vmem:[#allocation8 + $0x2e8] sm:$0xff]
    %v350 = vld [vmem:[#allocation8 + $0x2f0] sm:$0xff]
    %v351 = vld [vmem:[#allocation8 + $0x2f8] sm:$0xff]
    %v352 = vld [vmem:[#allocation8 + $0x300] sm:$0xff]
    %v353 = vld [vmem:[#allocation8 + $0x308] sm:$0xff]
    %v354 = vld [vmem:[#allocation8 + $0x310] sm:$0xff]
    %v355 = vld [vmem:[#allocation8 + $0x318] sm:$0xff]
    %v356 = vld [vmem:[#allocation8 + $0x320] sm:$0xff]
    %v357 = vld [vmem:[#allocation8 + $0x328] sm:$0xff]
    %v358 = vld [vmem:[#allocation8 + $0x330] sm:$0xff]
    %v359 = vld [vmem:[#allocation8 + $0x338] sm:$0xff]
    %v360 = vld [vmem:[#allocation8 + $0x340] sm:$0xff]
    %v361 = vld [vmem:[#allocation8 + $0x348] sm:$0xff]
    %v362 = vld [vmem:[#allocation8 + $0x350] sm:$0xff]
    %v363 = vld [vmem:[#allocation8 + $0x358] sm:$0xff]
    %v364 = vld [vmem:[#allocation8 + $0x360] sm:$0xff]
    %v365 = vld [vmem:[#allocation8 + $0x368] sm:$0xff]
    %v366 = vld [vmem:[#allocation8 + $0x370] sm:$0xff]
    %v367 = vld [vmem:[#allocation8 + $0x378] sm:$0xff]
    %v368 = vld [vmem:[#allocation8 + $0x380] sm:$0xff]
    %v369 = vld [vmem:[#allocation8 + $0x388] sm:$0xff]
    %v370 = vld [vmem:[#allocation8 + $0x390] sm:$0xff]
    %v371 = vld [vmem:[#allocation8 + $0x398] sm:$0xff]
    %v372 = vld [vmem:[#allocation8 + $0x3a0] sm:$0xff]
    %v373 = vld [vmem:[#allocation8 + $0x3a8] sm:$0xff]
    %v374 = vld [vmem:[#allocation8 + $0x3b0] sm:$0xff]
    %v375 = vld [vmem:[#allocation8 + $0x3b8] sm:$0xff]
    %v376 = vld [vmem:[#allocation8 + $0x3c0] sm:$0xff]
    %v377 = vld [vmem:[#allocation8 + $0x3c8] sm:$0xff]
    %v378 = vld [vmem:[#allocation8 + $0x3d0] sm:$0xff]
    %v379 = vld [vmem:[#allocation8 + $0x3d8] sm:$0xff]
    %v380 = vld [vmem:[#allocation8 + $0x3e0] sm:$0xff]
    %v381 = vld [vmem:[#allocation8 + $0x3e8] sm:$0xff]
    %v382 = vld [vmem:[#allocation8 + $0x3f0] sm:$0xff]
    %v383 = vld [vmem:[#allocation8 + $0x3f8] sm:$0xff]
    %v384 = vld [vmem:[#allocation8 + $0x400] sm:$0xff]
    %v385 = vld [vmem:[#allocation8 + $0x408] sm:$0xff]
    %v386 = vld [vmem:[#allocation8 + $0x410] sm:$0xff]
    %v387 = vld [vmem:[#allocation8 + $0x418] sm:$0xff]
    %v388 = vld [vmem:[#allocation8 + $0x420] sm:$0xff]
    %v389 = vld [vmem:[#allocation8 + $0x428] sm:$0xff]
    %v390 = vld [vmem:[#allocation8 + $0x430] sm:$0xff]
    %v391 = vld [vmem:[#allocation8 + $0x438] sm:$0xff]
    %v392 = vld [vmem:[#allocation8 + $0x440] sm:$0xff]
    %v393 = vld [vmem:[#allocation8 + $0x448] sm:$0xff]
    %v394 = vld [vmem:[#allocation8 + $0x450] sm:$0xff]
    %v395 = vld [vmem:[#allocation8 + $0x458] sm:$0xff]
    %v396 = vld [vmem:[#allocation8 + $0x460] sm:$0xff]
    %v397 = vld [vmem:[#allocation8 + $0x468] sm:$0xff]
    %v398 = vld [vmem:[#allocation8 + $0x470] sm:$0xff]
    %v399 = vld [vmem:[#allocation8 + $0x478] sm:$0xff]
    %v400 = vld [vmem:[%s4] sm:$0x7]
    %v402 = vperm.slane %v400, 0
    %v403 = vperm.slane %v400, 1
    %v404 = vperm.slane %v400, 2
    %408 = vmatpush.msra.mxu0 %v301
    %409 = vmatpush.msra.mxu0 %v298
    %410 = vmatpush.msra.mxu0 %v295
    %411 = vmatpush.msra.mxu0 %v292
    %412 = vmatpush.msra.mxu0 %v289
    %413 = vmatpush.msra.mxu0 %v286
    %414 = vmatpush.msra.mxu0 %v283
    %415 = vmatpush.msra.mxu0 %v280
    %416 = vmatpush.msra.mxu0 %v277
    %417 = vmatpush.msra.mxu0 %v274
    %418 = vmatpush.msra.mxu0 %v271
    %419 = vmatpush.msra.mxu0 %v268
    %420 = vmatpush.msra.mxu0 %v265
    %421 = vmatpush.msra.mxu0 %v262
    %422 = vmatpush.msra.mxu0 %v259
    %423 = vmatpush.msra.mxu0 %v256
    %424 = vmatmul.f32.gmra.mxu0 %v253
    %v425 = vpop.f32.mrf.mxu0
    %v426 = vadd.f32 %v402, %v425
    %427 = vdwg.mxu0
    %428 = vmatpush.msra.mxu0 %v349
    %429 = vmatpush.msra.mxu0 %v346
    %430 = vmatpush.msra.mxu0 %v343
    %431 = vmatpush.msra.mxu0 %v340
    %432 = vmatpush.msra.mxu0 %v337
    %433 = vmatpush.msra.mxu0 %v334
    %434 = vmatpush.msra.mxu0 %v331
    %435 = vmatpush.msra.mxu0 %v328
    %436 = vmatpush.msra.mxu0 %v325
    %437 = vmatpush.msra.mxu0 %v322
    %438 = vmatpush.msra.mxu0 %v319
    %439 = vmatpush.msra.mxu0 %v316
    %440 = vmatpush.msra.mxu0 %v313
    %441 = vmatpush.msra.mxu0 %v310
    %442 = vmatpush.msra.mxu0 %v307
    %443 = vmatpush.msra.mxu0 %v304
    %444 = vmatmul.f32.gmra.mxu0 %v254
    %v445 = vpop.f32.mrf.mxu0
    %v446 = vadd.f32 %v426, %v445
    %447 = vdwg.mxu0
    %448 = vmatpush.msra.mxu0 %v397
    %449 = vmatpush.msra.mxu0 %v394
    %450 = vmatpush.msra.mxu0 %v391
    %451 = vmatpush.msra.mxu0 %v388
    %452 = vmatpush.msra.mxu0 %v385
    %453 = vmatpush.msra.mxu0 %v382
    %454 = vmatpush.msra.mxu0 %v379
    %455 = vmatpush.msra.mxu0 %v376
    %456 = vmatpush.msra.mxu0 %v373
    %457 = vmatpush.msra.mxu0 %v370
    %458 = vmatpush.msra.mxu0 %v367
    %459 = vmatpush.msra.mxu0 %v364
    %460 = vmatpush.msra.mxu0 %v361
    %461 = vmatpush.msra.mxu0 %v358
    %462 = vmatpush.msra.mxu0 %v355
    %463 = vmatpush.msra.mxu0 %v352
    %464 = vmatmul.f32.gmra.mxu0 %v255
    %v465 = vpop.f32.mrf.mxu0
    %v466 = vadd.f32 %v446, %v465
    %467 = vdwg.mxu0
    %468 = vmatpush.msra.mxu0 %v302
    %469 = vmatpush.msra.mxu0 %v299
    %470 = vmatpush.msra.mxu0 %v296
    %471 = vmatpush.msra.mxu0 %v293
    %472 = vmatpush.msra.mxu0 %v290
    %473 = vmatpush.msra.mxu0 %v287
    %474 = vmatpush.msra.mxu0 %v284
    %475 = vmatpush.msra.mxu0 %v281
    %476 = vmatpush.msra.mxu0 %v278
    %477 = vmatpush.msra.mxu0 %v275
    %478 = vmatpush.msra.mxu0 %v272
    %479 = vmatpush.msra.mxu0 %v269
    %480 = vmatpush.msra.mxu0 %v266
    %481 = vmatpush.msra.mxu0 %v263
    %482 = vmatpush.msra.mxu0 %v260
    %483 = vmatpush.msra.mxu0 %v257
    %484 = vmatmul.f32.gmra.mxu0 %v253
    %v485 = vpop.f32.mrf.mxu0
    %v486 = vadd.f32 %v403, %v485
    %487 = vdwg.mxu0
    %488 = vmatpush.msra.mxu0 %v350
    %489 = vmatpush.msra.mxu0 %v347
    %490 = vmatpush.msra.mxu0 %v344
    %491 = vmatpush.msra.mxu0 %v341
    %492 = vmatpush.msra.mxu0 %v338
    %493 = vmatpush.msra.mxu0 %v335
    %494 = vmatpush.msra.mxu0 %v332
    %495 = vmatpush.msra.mxu0 %v329
    %496 = vmatpush.msra.mxu0 %v326
    %497 = vmatpush.msra.mxu0 %v323
    %498 = vmatpush.msra.mxu0 %v320
    %499 = vmatpush.msra.mxu0 %v317
    %500 = vmatpush.msra.mxu0 %v314
    %501 = vmatpush.msra.mxu0 %v311
    %502 = vmatpush.msra.mxu0 %v308
    %503 = vmatpush.msra.mxu0 %v305
    %504 = vmatmul.f32.gmra.mxu0 %v254
    %v505 = vpop.f32.mrf.mxu0
    %v506 = vadd.f32 %v486, %v505
    %507 = vdwg.mxu0
    %508 = vmatpush.msra.mxu0 %v398
    %509 = vmatpush.msra.mxu0 %v395
    %510 = vmatpush.msra.mxu0 %v392
    %511 = vmatpush.msra.mxu0 %v389
    %512 = vmatpush.msra.mxu0 %v386
    %513 = vmatpush.msra.mxu0 %v383
    %514 = vmatpush.msra.mxu0 %v380
    %515 = vmatpush.msra.mxu0 %v377
    %516 = vmatpush.msra.mxu0 %v374
    %517 = vmatpush.msra.mxu0 %v371
    %518 = vmatpush.msra.mxu0 %v368
    %519 = vmatpush.msra.mxu0 %v365
    %520 = vmatpush.msra.mxu0 %v362
    %521 = vmatpush.msra.mxu0 %v359
    %522 = vmatpush.msra.mxu0 %v356
    %523 = vmatpush.msra.mxu0 %v353
    %524 = vmatmul.f32.gmra.mxu0 %v255
    %v525 = vpop.f32.mrf.mxu0
    %v526 = vadd.f32 %v506, %v525
    %527 = vdwg.mxu0
    %528 = vmatpush.msra.mxu0 %v303
    %529 = vmatpush.msra.mxu0 %v300
    %530 = vmatpush.msra.mxu0 %v297
    %531 = vmatpush.msra.mxu0 %v294
    %532 = vmatpush.msra.mxu0 %v291
    %533 = vmatpush.msra.mxu0 %v288
    %534 = vmatpush.msra.mxu0 %v285
    %535 = vmatpush.msra.mxu0 %v282
    %536 = vmatpush.msra.mxu0 %v279
    %537 = vmatpush.msra.mxu0 %v276
    %538 = vmatpush.msra.mxu0 %v273
    %539 = vmatpush.msra.mxu0 %v270
    %540 = vmatpush.msra.mxu0 %v267
    %541 = vmatpush.msra.mxu0 %v264
    %542 = vmatpush.msra.mxu0 %v261
    %543 = vmatpush.msra.mxu0 %v258
    %544 = vmatmul.f32.gmra.mxu0 %v253
    %v545 = vpop.f32.mrf.mxu0
    %v546 = vadd.f32 %v404, %v545
    %547 = vdwg.mxu0
    %548 = vmatpush.msra.mxu0 %v351
    %549 = vmatpush.msra.mxu0 %v348
    %550 = vmatpush.msra.mxu0 %v345
    %551 = vmatpush.msra.mxu0 %v342
    %552 = vmatpush.msra.mxu0 %v339
    %553 = vmatpush.msra.mxu0 %v336
    %554 = vmatpush.msra.mxu0 %v333
    %555 = vmatpush.msra.mxu0 %v330
    %556 = vmatpush.msra.mxu0 %v327
    %557 = vmatpush.msra.mxu0 %v324
    %558 = vmatpush.msra.mxu0 %v321
    %559 = vmatpush.msra.mxu0 %v318
    %560 = vmatpush.msra.mxu0 %v315
    %561 = vmatpush.msra.mxu0 %v312
    %562 = vmatpush.msra.mxu0 %v309
    %563 = vmatpush.msra.mxu0 %v306
    %564 = vmatmul.f32.gmra.mxu0 %v254
    %v565 = vpop.f32.mrf.mxu0
    %v566 = vadd.f32 %v546, %v565
    %567 = vdwg.mxu0
    %568 = vmatpush.msra.mxu0 %v399
    %569 = vmatpush.msra.mxu0 %v396
    %570 = vmatpush.msra.mxu0 %v393
    %571 = vmatpush.msra.mxu0 %v390
    %572 = vmatpush.msra.mxu0 %v387
    %573 = vmatpush.msra.mxu0 %v384
    %574 = vmatpush.msra.mxu0 %v381
    %575 = vmatpush.msra.mxu0 %v378
    %576 = vmatpush.msra.mxu0 %v375
    %577 = vmatpush.msra.mxu0 %v372
    %578 = vmatpush.msra.mxu0 %v369
    %579 = vmatpush.msra.mxu0 %v366
    %580 = vmatpush.msra.mxu0 %v363
    %581 = vmatpush.msra.mxu0 %v360
    %582 = vmatpush.msra.mxu0 %v357
    %583 = vmatpush.msra.mxu0 %v354
    %584 = vmatmul.f32.gmra.mxu0 %v255
    %v585 = vpop.f32.mrf.mxu0
    %v586 = vadd.f32 %v566, %v585
    %587 = vdwg.mxu0
    %v588 = vmax.f32 %v466, 0.0
    %v589 = vmax.f32 %v526, 0.0
    %v590 = vmax.f32 %v586, 0.0
    %v591 = vld [vmem:[#allocation10] sm:$0xff]
    %v592 = vld [vmem:[#allocation10 + $0x8] sm:$0xff]
    %v593 = vld [vmem:[#allocation10 + $0x10] sm:$0xff]
    %v594 = vld [vmem:[#allocation10 + $0x18] sm:$0xff]
    %v595 = vld [vmem:[#allocation10 + $0x20] sm:$0xff]
    %v596 = vld [vmem:[#allocation10 + $0x28] sm:$0xff]
    %v597 = vld [vmem:[#allocation10 + $0x30] sm:$0xff]
    %v598 = vld [vmem:[#allocation10 + $0x38] sm:$0xff]
    %v599 = vld [vmem:[#allocation10 + $0x40] sm:$0xff]
    %v600 = vld [vmem:[#allocation10 + $0x48] sm:$0xff]
    %v601 = vld [vmem:[#allocation10 + $0x50] sm:$0xff]
    %v602 = vld [vmem:[#allocation10 + $0x58] sm:$0xff]
    %v603 = vld [vmem:[#allocation10 + $0x60] sm:$0xff]
    %v604 = vld [vmem:[#allocation10 + $0x68] sm:$0xff]
    %v605 = vld [vmem:[#allocation10 + $0x70] sm:$0xff]
    %v606 = vld [vmem:[#allocation10 + $0x78] sm:$0xff]
    %v607 = vld [vmem:[#allocation10 + $0x80] sm:$0xff]
    %v608 = vld [vmem:[#allocation10 + $0x88] sm:$0xff]
    %v609 = vld [vmem:[#allocation10 + $0x90] sm:$0xff]
    %v610 = vld [vmem:[#allocation10 + $0x98] sm:$0xff]
    %v611 = vld [vmem:[#allocation10 + $0xa0] sm:$0xff]
    %v612 = vld [vmem:[#allocation10 + $0xa8] sm:$0xff]
    %v613 = vld [vmem:[#allocation10 + $0xb0] sm:$0xff]
    %v614 = vld [vmem:[#allocation10 + $0xb8] sm:$0xff]
    %v615 = vld [vmem:[#allocation10 + $0xc0] sm:$0xff]
    %v616 = vld [vmem:[#allocation10 + $0xc8] sm:$0xff]
    %v617 = vld [vmem:[#allocation10 + $0xd0] sm:$0xff]
    %v618 = vld [vmem:[#allocation10 + $0xd8] sm:$0xff]
    %v619 = vld [vmem:[#allocation10 + $0xe0] sm:$0xff]
    %v620 = vld [vmem:[#allocation10 + $0xe8] sm:$0xff]
    %v621 = vld [vmem:[#allocation10 + $0xf0] sm:$0xff]
    %v622 = vld [vmem:[#allocation10 + $0xf8] sm:$0xff]
    %v623 = vld [vmem:[#allocation10 + $0x100] sm:$0xff]
    %v624 = vld [vmem:[#allocation10 + $0x108] sm:$0xff]
    %v625 = vld [vmem:[#allocation10 + $0x110] sm:$0xff]
    %v626 = vld [vmem:[#allocation10 + $0x118] sm:$0xff]
    %v627 = vld [vmem:[#allocation10 + $0x120] sm:$0xff]
    %v628 = vld [vmem:[#allocation10 + $0x128] sm:$0xff]
    %v629 = vld [vmem:[#allocation10 + $0x130] sm:$0xff]
    %v630 = vld [vmem:[#allocation10 + $0x138] sm:$0xff]
    %v631 = vld [vmem:[#allocation10 + $0x140] sm:$0xff]
    %v632 = vld [vmem:[#allocation10 + $0x148] sm:$0xff]
    %v633 = vld [vmem:[#allocation10 + $0x150] sm:$0xff]
    %v634 = vld [vmem:[#allocation10 + $0x158] sm:$0xff]
    %v635 = vld [vmem:[#allocation10 + $0x160] sm:$0xff]
    %v636 = vld [vmem:[#allocation10 + $0x168] sm:$0xff]
    %v637 = vld [vmem:[#allocation10 + $0x170] sm:$0xff]
    %v638 = vld [vmem:[#allocation10 + $0x178] sm:$0xff]
    %v639 = vld [vmem:[#allocation10 + $0x180] sm:$0xff]
    %v640 = vld [vmem:[#allocation10 + $0x188] sm:$0xff]
    %v641 = vld [vmem:[#allocation10 + $0x190] sm:$0xff]
    %v642 = vld [vmem:[#allocation10 + $0x198] sm:$0xff]
    %v643 = vld [vmem:[#allocation10 + $0x1a0] sm:$0xff]
    %v644 = vld [vmem:[#allocation10 + $0x1a8] sm:$0xff]
    %v645 = vld [vmem:[#allocation10 + $0x1b0] sm:$0xff]
    %v646 = vld [vmem:[#allocation10 + $0x1b8] sm:$0xff]
    %v647 = vld [vmem:[#allocation10 + $0x1c0] sm:$0xff]
    %v648 = vld [vmem:[#allocation10 + $0x1c8] sm:$0xff]
    %v649 = vld [vmem:[#allocation10 + $0x1d0] sm:$0xff]
    %v650 = vld [vmem:[#allocation10 + $0x1d8] sm:$0xff]
    %v651 = vld [vmem:[#allocation10 + $0x1e0] sm:$0xff]
    %v652 = vld [vmem:[#allocation10 + $0x1e8] sm:$0xff]
    %v653 = vld [vmem:[#allocation10 + $0x1f0] sm:$0xff]
    %v654 = vld [vmem:[#allocation10 + $0x1f8] sm:$0xff]
    %v655 = vld [vmem:[#allocation10 + $0x200] sm:$0xff]
    %v656 = vld [vmem:[#allocation10 + $0x208] sm:$0xff]
    %v657 = vld [vmem:[#allocation10 + $0x210] sm:$0xff]
    %v658 = vld [vmem:[#allocation10 + $0x218] sm:$0xff]
    %v659 = vld [vmem:[#allocation10 + $0x220] sm:$0xff]
    %v660 = vld [vmem:[#allocation10 + $0x228] sm:$0xff]
    %v661 = vld [vmem:[#allocation10 + $0x230] sm:$0xff]
    %v662 = vld [vmem:[#allocation10 + $0x238] sm:$0xff]
    %v663 = vld [vmem:[#allocation10 + $0x240] sm:$0xff]
    %v664 = vld [vmem:[#allocation10 + $0x248] sm:$0xff]
    %v665 = vld [vmem:[#allocation10 + $0x250] sm:$0xff]
    %v666 = vld [vmem:[#allocation10 + $0x258] sm:$0xff]
    %v667 = vld [vmem:[#allocation10 + $0x260] sm:$0xff]
    %v668 = vld [vmem:[#allocation10 + $0x268] sm:$0xff]
    %v669 = vld [vmem:[#allocation10 + $0x270] sm:$0xff]
    %v670 = vld [vmem:[#allocation10 + $0x278] sm:$0xff]
    %v671 = vld [vmem:[#allocation10 + $0x280] sm:$0xff]
    %v672 = vld [vmem:[#allocation10 + $0x288] sm:$0xff]
    %v673 = vld [vmem:[#allocation10 + $0x290] sm:$0xff]
    %v674 = vld [vmem:[#allocation10 + $0x298] sm:$0xff]
    %v675 = vld [vmem:[#allocation10 + $0x2a0] sm:$0xff]
    %v676 = vld [vmem:[#allocation10 + $0x2a8] sm:$0xff]
    %v677 = vld [vmem:[#allocation10 + $0x2b0] sm:$0xff]
    %v678 = vld [vmem:[#allocation10 + $0x2b8] sm:$0xff]
    %v679 = vld [vmem:[#allocation10 + $0x2c0] sm:$0xff]
    %v680 = vld [vmem:[#allocation10 + $0x2c8] sm:$0xff]
    %v681 = vld [vmem:[#allocation10 + $0x2d0] sm:$0xff]
    %v682 = vld [vmem:[#allocation10 + $0x2d8] sm:$0xff]
    %v683 = vld [vmem:[#allocation10 + $0x2e0] sm:$0xff]
    %v684 = vld [vmem:[#allocation10 + $0x2e8] sm:$0xff]
    %v685 = vld [vmem:[#allocation10 + $0x2f0] sm:$0xff]
    %v686 = vld [vmem:[#allocation10 + $0x2f8] sm:$0xff]
    %v687 = vld [vmem:[#allocation10 + $0x300] sm:$0xff]
    %v688 = vld [vmem:[#allocation10 + $0x308] sm:$0xff]
    %v689 = vld [vmem:[#allocation10 + $0x310] sm:$0xff]
    %v690 = vld [vmem:[#allocation10 + $0x318] sm:$0xff]
    %v691 = vld [vmem:[#allocation10 + $0x320] sm:$0xff]
    %v692 = vld [vmem:[#allocation10 + $0x328] sm:$0xff]
    %v693 = vld [vmem:[#allocation10 + $0x330] sm:$0xff]
    %v694 = vld [vmem:[#allocation10 + $0x338] sm:$0xff]
    %v695 = vld [vmem:[#allocation10 + $0x340] sm:$0xff]
    %v696 = vld [vmem:[#allocation10 + $0x348] sm:$0xff]
    %v697 = vld [vmem:[#allocation10 + $0x350] sm:$0xff]
    %v698 = vld [vmem:[#allocation10 + $0x358] sm:$0xff]
    %v699 = vld [vmem:[#allocation10 + $0x360] sm:$0xff]
    %v700 = vld [vmem:[#allocation10 + $0x368] sm:$0xff]
    %v701 = vld [vmem:[#allocation10 + $0x370] sm:$0xff]
    %v702 = vld [vmem:[#allocation10 + $0x378] sm:$0xff]
    %v703 = vld [vmem:[#allocation10 + $0x380] sm:$0xff]
    %v704 = vld [vmem:[#allocation10 + $0x388] sm:$0xff]
    %v705 = vld [vmem:[#allocation10 + $0x390] sm:$0xff]
    %v706 = vld [vmem:[#allocation10 + $0x398] sm:$0xff]
    %v707 = vld [vmem:[#allocation10 + $0x3a0] sm:$0xff]
    %v708 = vld [vmem:[#allocation10 + $0x3a8] sm:$0xff]
    %v709 = vld [vmem:[#allocation10 + $0x3b0] sm:$0xff]
    %v710 = vld [vmem:[#allocation10 + $0x3b8] sm:$0xff]
    %v711 = vld [vmem:[#allocation10 + $0x3c0] sm:$0xff]
    %v712 = vld [vmem:[#allocation10 + $0x3c8] sm:$0xff]
    %v713 = vld [vmem:[#allocation10 + $0x3d0] sm:$0xff]
    %v714 = vld [vmem:[#allocation10 + $0x3d8] sm:$0xff]
    %v715 = vld [vmem:[#allocation10 + $0x3e0] sm:$0xff]
    %v716 = vld [vmem:[#allocation10 + $0x3e8] sm:$0xff]
    %v717 = vld [vmem:[#allocation10 + $0x3f0] sm:$0xff]
    %v718 = vld [vmem:[#allocation10 + $0x3f8] sm:$0xff]
    %v719 = vld [vmem:[#allocation10 + $0x400] sm:$0xff]
    %v720 = vld [vmem:[#allocation10 + $0x408] sm:$0xff]
    %v721 = vld [vmem:[#allocation10 + $0x410] sm:$0xff]
    %v722 = vld [vmem:[#allocation10 + $0x418] sm:$0xff]
    %v723 = vld [vmem:[#allocation10 + $0x420] sm:$0xff]
    %v724 = vld [vmem:[#allocation10 + $0x428] sm:$0xff]
    %v725 = vld [vmem:[#allocation10 + $0x430] sm:$0xff]
    %v726 = vld [vmem:[#allocation10 + $0x438] sm:$0xff]
    %v727 = vld [vmem:[#allocation10 + $0x440] sm:$0xff]
    %v728 = vld [vmem:[#allocation10 + $0x448] sm:$0xff]
    %v729 = vld [vmem:[#allocation10 + $0x450] sm:$0xff]
    %v730 = vld [vmem:[#allocation10 + $0x458] sm:$0xff]
    %v731 = vld [vmem:[#allocation10 + $0x460] sm:$0xff]
    %v732 = vld [vmem:[#allocation10 + $0x468] sm:$0xff]
    %v733 = vld [vmem:[#allocation10 + $0x470] sm:$0xff]
    %v734 = vld [vmem:[#allocation10 + $0x478] sm:$0xff]
    %v735 = vld [vmem:[#allocation11] sm:$0x7]
    %v737 = vperm.slane %v735, 0
    %v738 = vperm.slane %v735, 1
    %v739 = vperm.slane %v735, 2
    %743 = vmatpush.msra.mxu0 %v636
    %744 = vmatpush.msra.mxu0 %v633
    %745 = vmatpush.msra.mxu0 %v630
    %746 = vmatpush.msra.mxu0 %v627
    %747 = vmatpush.msra.mxu0 %v624
    %748 = vmatpush.msra.mxu0 %v621
    %749 = vmatpush.msra.mxu0 %v618
    %750 = vmatpush.msra.mxu0 %v615
    %751 = vmatpush.msra.mxu0 %v612
    %752 = vmatpush.msra.mxu0 %v609
    %753 = vmatpush.msra.mxu0 %v606
    %754 = vmatpush.msra.mxu0 %v603
    %755 = vmatpush.msra.mxu0 %v600
    %756 = vmatpush.msra.mxu0 %v597
    %757 = vmatpush.msra.mxu0 %v594
    %758 = vmatpush.msra.mxu0 %v591
    %759 = vmatmul.f32.gmra.mxu0 %v588
    %v760 = vpop.f32.mrf.mxu0
    %v761 = vadd.f32 %v737, %v760
    %762 = vdwg.mxu0
    %763 = vmatpush.msra.mxu0 %v684
    %764 = vmatpush.msra.mxu0 %v681
    %765 = vmatpush.msra.mxu0 %v678
    %766 = vmatpush.msra.mxu0 %v675
    %767 = vmatpush.msra.mxu0 %v672
    %768 = vmatpush.msra.mxu0 %v669
    %769 = vmatpush.msra.mxu0 %v666
    %770 = vmatpush.msra.mxu0 %v663
    %771 = vmatpush.msra.mxu0 %v660
    %772 = vmatpush.msra.mxu0 %v657
    %773 = vmatpush.msra.mxu0 %v654
    %774 = vmatpush.msra.mxu0 %v651
    %775 = vmatpush.msra.mxu0 %v648
    %776 = vmatpush.msra.mxu0 %v645
    %777 = vmatpush.msra.mxu0 %v642
    %778 = vmatpush.msra.mxu0 %v639
    %779 = vmatmul.f32.gmra.mxu0 %v589
    %v780 = vpop.f32.mrf.mxu0
    %v781 = vadd.f32 %v761, %v780
    %782 = vdwg.mxu0
    %783 = vmatpush.msra.mxu0 %v732
    %784 = vmatpush.msra.mxu0 %v729
    %785 = vmatpush.msra.mxu0 %v726
    %786 = vmatpush.msra.mxu0 %v723
    %787 = vmatpush.msra.mxu0 %v720
    %788 = vmatpush.msra.mxu0 %v717
    %789 = vmatpush.msra.mxu0 %v714
    %790 = vmatpush.msra.mxu0 %v711
    %791 = vmatpush.msra.mxu0 %v708
    %792 = vmatpush.msra.mxu0 %v705
    %793 = vmatpush.msra.mxu0 %v702
    %794 = vmatpush.msra.mxu0 %v699
    %795 = vmatpush.msra.mxu0 %v696
    %796 = vmatpush.msra.mxu0 %v693
    %797 = vmatpush.msra.mxu0 %v690
    %798 = vmatpush.msra.mxu0 %v687
    %799 = vmatmul.f32.gmra.mxu0 %v590
    %v800 = vpop.f32.mrf.mxu0
    %v801 = vadd.f32 %v781, %v800
    %802 = vdwg.mxu0
    %803 = vmatpush.msra.mxu0 %v637
    %804 = vmatpush.msra.mxu0 %v634
    %805 = vmatpush.msra.mxu0 %v631
    %806 = vmatpush.msra.mxu0 %v628
    %807 = vmatpush.msra.mxu0 %v625
    %808 = vmatpush.msra.mxu0 %v622
    %809 = vmatpush.msra.mxu0 %v619
    %810 = vmatpush.msra.mxu0 %v616
    %811 = vmatpush.msra.mxu0 %v613
    %812 = vmatpush.msra.mxu0 %v610
    %813 = vmatpush.msra.mxu0 %v607
    %814 = vmatpush.msra.mxu0 %v604
    %815 = vmatpush.msra.mxu0 %v601
    %816 = vmatpush.msra.mxu0 %v598
    %817 = vmatpush.msra.mxu0 %v595
    %818 = vmatpush.msra.mxu0 %v592
    %819 = vmatmul.f32.gmra.mxu0 %v588
    %v820 = vpop.f32.mrf.mxu0
    %v821 = vadd.f32 %v738, %v820
    %822 = vdwg.mxu0
    %823 = vmatpush.msra.mxu0 %v685
    %824 = vmatpush.msra.mxu0 %v682
    %825 = vmatpush.msra.mxu0 %v679
    %826 = vmatpush.msra.mxu0 %v676
    %827 = vmatpush.msra.mxu0 %v673
    %828 = vmatpush.msra.mxu0 %v670
    %829 = vmatpush.msra.mxu0 %v667
    %830 = vmatpush.msra.mxu0 %v664
    %831 = vmatpush.msra.mxu0 %v661
    %832 = vmatpush.msra.mxu0 %v658
    %833 = vmatpush.msra.mxu0 %v655
    %834 = vmatpush.msra.mxu0 %v652
    %835 = vmatpush.msra.mxu0 %v649
    %836 = vmatpush.msra.mxu0 %v646
    %837 = vmatpush.msra.mxu0 %v643
    %838 = vmatpush.msra.mxu0 %v640
    %839 = vmatmul.f32.gmra.mxu0 %v589
    %v840 = vpop.f32.mrf.mxu0
    %v841 = vadd.f32 %v821, %v840
    %842 = vdwg.mxu0
    %843 = vmatpush.msra.mxu0 %v733
    %844 = vmatpush.msra.mxu0 %v730
    %845 = vmatpush.msra.mxu0 %v727
    %846 = vmatpush.msra.mxu0 %v724
    %847 = vmatpush.msra.mxu0 %v721
    %848 = vmatpush.msra.mxu0 %v718
    %849 = vmatpush.msra.mxu0 %v715
    %850 = vmatpush.msra.mxu0 %v712
    %851 = vmatpush.msra.mxu0 %v709
    %852 = vmatpush.msra.mxu0 %v706
    %853 = vmatpush.msra.mxu0 %v703
    %854 = vmatpush.msra.mxu0 %v700
    %855 = vmatpush.msra.mxu0 %v697
    %856 = vmatpush.msra.mxu0 %v694
    %857 = vmatpush.msra.mxu0 %v691
    %858 = vmatpush.msra.mxu0 %v688
    %859 = vmatmul.f32.gmra.mxu0 %v590
    %v860 = vpop.f32.mrf.mxu0
    %v861 = vadd.f32 %v841, %v860
    %862 = vdwg.mxu0
    %863 = vmatpush.msra.mxu0 %v638
    %864 = vmatpush.msra.mxu0 %v635
    %865 = vmatpush.msra.mxu0 %v632
    %866 = vmatpush.msra.mxu0 %v629
    %867 = vmatpush.msra.mxu0 %v626
    %868 = vmatpush.msra.mxu0 %v623
    %869 = vmatpush.msra.mxu0 %v620
    %870 = vmatpush.msra.mxu0 %v617
    %871 = vmatpush.msra.mxu0 %v614
    %872 = vmatpush.msra.mxu0 %v611
    %873 = vmatpush.msra.mxu0 %v608
    %874 = vmatpush.msra.mxu0 %v605
    %875 = vmatpush.msra.mxu0 %v602
    %876 = vmatpush.msra.mxu0 %v599
    %877 = vmatpush.msra.mxu0 %v596
    %878 = vmatpush.msra.mxu0 %v593
    %879 = vmatmul.f32.gmra.mxu0 %v588
    %v880 = vpop.f32.mrf.mxu0
    %v881 = vadd.f32 %v739, %v880
    %882 = vdwg.mxu0
    %883 = vmatpush.msra.mxu0 %v686
    %884 = vmatpush.msra.mxu0 %v683
    %885 = vmatpush.msra.mxu0 %v680
    %886 = vmatpush.msra.mxu0 %v677
    %887 = vmatpush.msra.mxu0 %v674
    %888 = vmatpush.msra.mxu0 %v671
    %889 = vmatpush.msra.mxu0 %v668
    %890 = vmatpush.msra.mxu0 %v665
    %891 = vmatpush.msra.mxu0 %v662
    %892 = vmatpush.msra.mxu0 %v659
    %893 = vmatpush.msra.mxu0 %v656
    %894 = vmatpush.msra.mxu0 %v653
    %895 = vmatpush.msra.mxu0 %v650
    %896 = vmatpush.msra.mxu0 %v647
    %897 = vmatpush.msra.mxu0 %v644
    %898 = vmatpush.msra.mxu0 %v641
    %899 = vmatmul.f32.gmra.mxu0 %v589
    %v900 = vpop.f32.mrf.mxu0
    %v901 = vadd.f32 %v881, %v900
    %902 = vdwg.mxu0
    %903 = vmatpush.msra.mxu0 %v734
    %904 = vmatpush.msra.mxu0 %v731
    %905 = vmatpush.msra.mxu0 %v728
    %906 = vmatpush.msra.mxu0 %v725
    %907 = vmatpush.msra.mxu0 %v722
    %908 = vmatpush.msra.mxu0 %v719
    %909 = vmatpush.msra.mxu0 %v716
    %910 = vmatpush.msra.mxu0 %v713
    %911 = vmatpush.msra.mxu0 %v710
    %912 = vmatpush.msra.mxu0 %v707
    %913 = vmatpush.msra.mxu0 %v704
    %914 = vmatpush.msra.mxu0 %v701
    %915 = vmatpush.msra.mxu0 %v698
    %916 = vmatpush.msra.mxu0 %v695
    %917 = vmatpush.msra.mxu0 %v692
    %918 = vmatpush.msra.mxu0 %v689
    %919 = vmatmul.f32.gmra.mxu0 %v590
    %v920 = vpop.f32.mrf.mxu0
    %v921 = vadd.f32 %v901, %v920
    %922 = vdwg.mxu0
    %v923 = vmax.f32 %v801, 0.0
    %v924 = vmax.f32 %v861, 0.0
    %v925 = vmax.f32 %v921, 0.0
    %v926 = vld [vmem:[#allocation13] sm:$0xff]
    %v927 = vld [vmem:[#allocation13 + $0x8] sm:$0xff]
    %v928 = vld [vmem:[#allocation13 + $0x10] sm:$0xff]
    %v929 = vld [vmem:[#allocation13 + $0x18] sm:$0xff]
    %v930 = vld [vmem:[#allocation13 + $0x20] sm:$0xff]
    %v931 = vld [vmem:[#allocation13 + $0x28] sm:$0xff]
    %v932 = vld [vmem:[#allocation13 + $0x30] sm:$0xff]
    %v933 = vld [vmem:[#allocation13 + $0x38] sm:$0xff]
    %v934 = vld [vmem:[#allocation13 + $0x40] sm:$0xff]
    %v935 = vld [vmem:[#allocation13 + $0x48] sm:$0xff]
    %v936 = vld [vmem:[#allocation13 + $0x50] sm:$0xff]
    %v937 = vld [vmem:[#allocation13 + $0x58] sm:$0xff]
    %v938 = vld [vmem:[#allocation13 + $0x60] sm:$0xff]
    %v939 = vld [vmem:[#allocation13 + $0x68] sm:$0xff]
    %v940 = vld [vmem:[#allocation13 + $0x70] sm:$0xff]
    %v941 = vld [vmem:[#allocation13 + $0x78] sm:$0xff]
    %v942 = vld [vmem:[#allocation13 + $0x80] sm:$0xff]
    %v943 = vld [vmem:[#allocation13 + $0x88] sm:$0xff]
    %v944 = vld [vmem:[#allocation13 + $0x90] sm:$0xff]
    %v945 = vld [vmem:[#allocation13 + $0x98] sm:$0xff]
    %v946 = vld [vmem:[#allocation13 + $0xa0] sm:$0xff]
    %v947 = vld [vmem:[#allocation13 + $0xa8] sm:$0xff]
    %v948 = vld [vmem:[#allocation13 + $0xb0] sm:$0xff]
    %v949 = vld [vmem:[#allocation13 + $0xb8] sm:$0xff]
    %v950 = vld [vmem:[#allocation13 + $0xc0] sm:$0xff]
    %v951 = vld [vmem:[#allocation13 + $0xc8] sm:$0xff]
    %v952 = vld [vmem:[#allocation13 + $0xd0] sm:$0xff]
    %v953 = vld [vmem:[#allocation13 + $0xd8] sm:$0xff]
    %v954 = vld [vmem:[#allocation13 + $0xe0] sm:$0xff]
    %v955 = vld [vmem:[#allocation13 + $0xe8] sm:$0xff]
    %v956 = vld [vmem:[#allocation13 + $0xf0] sm:$0xff]
    %v957 = vld [vmem:[#allocation13 + $0xf8] sm:$0xff]
    %v958 = vld [vmem:[#allocation13 + $0x100] sm:$0xff]
    %v959 = vld [vmem:[#allocation13 + $0x108] sm:$0xff]
    %v960 = vld [vmem:[#allocation13 + $0x110] sm:$0xff]
    %v961 = vld [vmem:[#allocation13 + $0x118] sm:$0xff]
    %v962 = vld [vmem:[#allocation13 + $0x120] sm:$0xff]
    %v963 = vld [vmem:[#allocation13 + $0x128] sm:$0xff]
    %v964 = vld [vmem:[#allocation13 + $0x130] sm:$0xff]
    %v965 = vld [vmem:[#allocation13 + $0x138] sm:$0xff]
    %v966 = vld [vmem:[#allocation13 + $0x140] sm:$0xff]
    %v967 = vld [vmem:[#allocation13 + $0x148] sm:$0xff]
    %v968 = vld [vmem:[#allocation13 + $0x150] sm:$0xff]
    %v969 = vld [vmem:[#allocation13 + $0x158] sm:$0xff]
    %v970 = vld [vmem:[#allocation13 + $0x160] sm:$0xff]
    %v971 = vld [vmem:[#allocation13 + $0x168] sm:$0xff]
    %v972 = vld [vmem:[#allocation13 + $0x170] sm:$0xff]
    %v973 = vld [vmem:[#allocation13 + $0x178] sm:$0xff]
    %v974 = vld [vmem:[%s8] sm:$0x1]
    %v976 = vperm.slane %v974, 0
    %978 = vmatpush.msra.mxu0 %v941
    %979 = vmatpush.msra.mxu0 %v940
    %980 = vmatpush.msra.mxu0 %v939
    %981 = vmatpush.msra.mxu0 %v938
    %982 = vmatpush.msra.mxu0 %v937
    %983 = vmatpush.msra.mxu0 %v936
    %984 = vmatpush.msra.mxu0 %v935
    %985 = vmatpush.msra.mxu0 %v934
    %986 = vmatpush.msra.mxu0 %v933
    %987 = vmatpush.msra.mxu0 %v932
    %988 = vmatpush.msra.mxu0 %v931
    %989 = vmatpush.msra.mxu0 %v930
    %990 = vmatpush.msra.mxu0 %v929
    %991 = vmatpush.msra.mxu0 %v928
    %992 = vmatpush.msra.mxu0 %v927
    %993 = vmatpush.msra.mxu0 %v926
    %994 = vmatmul.f32.gmra.mxu0 %v923
    %v995 = vpop.f32.mrf.mxu0
    %v996 = vadd.f32 %v976, %v995
    %997 = vdwg.mxu0
    %998 = vmatpush.msra.mxu0 %v957
    %999 = vmatpush.msra.mxu0 %v956
    %1000 = vmatpush.msra.mxu0 %v955
    %1001 = vmatpush.msra.mxu0 %v954
    %1002 = vmatpush.msra.mxu0 %v953
    %1003 = vmatpush.msra.mxu0 %v952
    %1004 = vmatpush.msra.mxu0 %v951
    %1005 = vmatpush.msra.mxu0 %v950
    %1006 = vmatpush.msra.mxu0 %v949
    %1007 = vmatpush.msra.mxu0 %v948
    %1008 = vmatpush.msra.mxu0 %v947
    %1009 = vmatpush.msra.mxu0 %v946
    %1010 = vmatpush.msra.mxu0 %v945
    %1011 = vmatpush.msra.mxu0 %v944
    %1012 = vmatpush.msra.mxu0 %v943
    %1013 = vmatpush.msra.mxu0 %v942
    %1014 = vmatmul.f32.gmra.mxu0 %v924
    %v1015 = vpop.f32.mrf.mxu0
    %v1016 = vadd.f32 %v996, %v1015
    %1017 = vdwg.mxu0
    %1018 = vmatpush.msra.mxu0 %v973
    %1019 = vmatpush.msra.mxu0 %v972
    %1020 = vmatpush.msra.mxu0 %v971
    %1021 = vmatpush.msra.mxu0 %v970
    %1022 = vmatpush.msra.mxu0 %v969
    %1023 = vmatpush.msra.mxu0 %v968
    %1024 = vmatpush.msra.mxu0 %v967
    %1025 = vmatpush.msra.mxu0 %v966
    %1026 = vmatpush.msra.mxu0 %v965
    %1027 = vmatpush.msra.mxu0 %v964
    %1028 = vmatpush.msra.mxu0 %v963
    %1029 = vmatpush.msra.mxu0 %v962
    %1030 = vmatpush.msra.mxu0 %v961
    %1031 = vmatpush.msra.mxu0 %v960
    %1032 = vmatpush.msra.mxu0 %v959
    %1033 = vmatpush.msra.mxu0 %v958
    %1034 = vmatmul.f32.gmra.mxu0 %v925
    %v1035 = vpop.f32.mrf.mxu0
    %v1036 = vadd.f32 %v1016, %v1035
    %1037 = vdwg.mxu0
    %v1038 = vmax.f32 %v1036, 0.0
    %v1039 = vmin.f32 %v1038, 1.0
    %1040 = vst [vmem:[#allocation14] sm:$0xff] %v1039
    // Predicated region
    $region66: #{tpu_custom_call.1} parent=1 // pred_check
      _
    $region67: #{tpu_custom_call.1} parent=1 // pred_check_branch
      %1042 = sbr.rel (0) target = $region69
    $region68: #{tpu_custom_call.1} parent=1 // pred_region
      %1044 = vsyncadd [#allocation4], 0
      %s1046 = sshll.u32 [#allocation14], 4
      %s1047 = int_to_ptr.vmem [resolvable:$true] %s1046
      %s1048 = sshll.u32 %s9, 4
      %s1049 = int_to_ptr.hbm [resolvable:$true] %s1048
      %1051 = dma.vmem_to_hbm [thread:$0]  %s1047, 128, %s1049, [#allocation4]
    $region69: #{tpu_custom_call.1} parent=1 // pred_fallthru
      _
    // Predicated region
    $region70: #{tpu_custom_call.1} parent=1 // pred_check
      _
    $region71: #{tpu_custom_call.1} parent=1 // pred_check_branch
      %1053 = sbr.rel (0) target = $region73
    $region72: #{tpu_custom_call.1} parent=1 // pred_region
      %1055 = dma.done [#allocation4], 128
    $region73: #{tpu_custom_call.1} parent=1 // pred_fallthru
      _
    %1056 = vsyncpa [#allocation3], 1
    %1057 = vsyncpa [#allocation6], 1
    %1058 = vsyncpa [#allocation9], 1
    %1059 = vsyncpa [#allocation12], 1
    %1060 = vsyncpa [#allocation4], 1

</llo_original>
